<compile_context>
chip_gen: v6e
topology: v6e:2x2x1
jax: 0.10.0
libtpu: 0.0.40
codegen_flags: <defaults>
</compile_context>

<pallas_src>
import functools

import jax
import jax.numpy as jnp
from jax import lax
from jax.experimental import pallas as pl
from jax.experimental.pallas import tpu as pltpu


def _round_up(x: int, m: int) -> int:
    return ((x + m - 1) // m) * m


def _sim_loss_kernel(out1_ref, out2_ref, label_ref, labelT_ref, o_ref,
                     *, n_true: int, row_tile: int):
    i = pl.program_id(0)
    n_pad = out1_ref.shape[0]

    row0 = pl.multiple_of(i * row_tile, row_tile)
    s1 = out1_ref[pl.ds(row0, row_tile), :]      # rows of out1 for this tile
    s2 = out2_ref[pl.ds(row0, row_tile), :]      # rows of out2 for this tile
    full1 = out1_ref[...]
    full2 = out2_ref[...]

    # a[r, c] = <out2[row0 + r], out1[c]>   (row tile of out2 @ out1.T)
    a = lax.dot_general(s2, full1, (((1,), (1,)), ((), ())),
                        preferred_element_type=jnp.float32)
    # b[r, c] = <out1[row0 + r], out2[c]>   (row tile of out1 @ out2.T)
    b = lax.dot_general(s1, full2, (((1,), (1,)), ((), ())),
                        preferred_element_type=jnp.float32)

    def log_phat(scores):
        # Mask padded columns so they never enter the softmax denominator.
        if n_true < n_pad:
            col = lax.broadcasted_iota(jnp.int32, scores.shape, 1)
            scores = jnp.where(col < n_true, scores, jnp.float32(-1e30))
        m = jnp.max(scores, axis=-1, keepdims=True)
        e = jnp.exp(scores - m)
        p = e / jnp.sum(e, axis=-1, keepdims=True)
        return jnp.log(p + 1e-4)

    # Padded rows of label / label.T are zero, so they contribute nothing.
    tile_loss = -(jnp.sum(label_ref[...] * log_phat(a)) +
                  jnp.sum(labelT_ref[...] * log_phat(b)))

    @pl.when(i == 0)
    def _():
        o_ref[0, 0] = jnp.float32(0.0)

    o_ref[0, 0] += tile_loss


def sim_loss(out1, out2, label, *, row_tile=None):
    """Pallas TPU implementation of SimLoss.forward(out1, out2, label)."""
    out1 = jnp.asarray(out1, jnp.float32)
    out2 = jnp.asarray(out2, jnp.float32)
    label = jnp.asarray(label, jnp.float32)

    n, m = out1.shape
    assert out2.shape == (n, m) and label.shape == (n, n)

    m_pad = _round_up(m, 128)                       # lane-dense MXU operands
    if row_tile is None:
        row_tile = min(128, _round_up(n, 8))        # VMEM-friendly tile cap
    row_tile = max(8, _round_up(int(row_tile), 8))
    n_pad = _round_up(n, row_tile)
    num_tiles = n_pad // row_tile

    # Zero-pad once in the wrapper (padding is masked inside the kernel).
    out1_p = jnp.zeros((n_pad, m_pad), jnp.float32).at[:n, :m].set(out1)
    out2_p = jnp.zeros((n_pad, m_pad), jnp.float32).at[:n, :m].set(out2)
    label_p = jnp.zeros((n_pad, n_pad), jnp.float32).at[:n, :n].set(label)
    labelT_p = label_p.T

    kernel = functools.partial(_sim_loss_kernel, n_true=n, row_tile=row_tile)

    grid_spec = pltpu.PrefetchScalarGridSpec(
        num_scalar_prefetch=0,
        grid=(num_tiles,),
        in_specs=[
            pl.BlockSpec((n_pad, m_pad), lambda i: (0, 0)),     # out1 resident
            pl.BlockSpec((n_pad, m_pad), lambda i: (0, 0)),     # out2 resident
            pl.BlockSpec((row_tile, n_pad), lambda i: (i, 0)),  # label rows
            pl.BlockSpec((row_tile, n_pad), lambda i: (i, 0)),  # label.T rows
        ],
        out_specs=pl.BlockSpec(memory_space=pltpu.MemorySpace.SMEM),
    )

    loss = pl.pallas_call(
        kernel,
        out_shape=jax.ShapeDtypeStruct((1, 1), jnp.float32),
        grid_spec=grid_spec,
        compiler_params=pltpu.CompilerParams(
            dimension_semantics=("arbitrary",)),   # scalar-loss reduction axis
    )(out1_p, out2_p, label_p, labelT_p)
    return loss[0, 0]


def sim_loss_reference(out1, out2, label):
    """Pure-JAX mirror of the PyTorch module, for verification."""
    ip1 = out2 @ out1.T                     # pairwise_inner_product(out1, out2)
    p1 = jax.nn.softmax(ip1, axis=-1)
    loss = jnp.sum(-label * jnp.log(p1 + 1e-4))
    ip2 = out1 @ out2.T                     # pairwise_inner_product(out2, out1)
    p2 = jax.nn.softmax(ip2, axis=-1)
    loss += jnp.sum(-label.T * jnp.log(p2 + 1e-4))
    return loss


if __name__ == "__main__":
    key = jax.random.PRNGKey(0)
    k1, k2, k3 = jax.random.split(key, 3)

    n, m = 16, 32
    out1 = jax.random.normal(k1, (n, m), jnp.float32)
    out2 = jax.random.normal(k2, (n, m), jnp.float32)
    label = jax.random.uniform(k3, (n, n), jnp.float32)

    # row_tile=8 -> grid of 2 row tiles, exercising the streamed/resident split.
    loss = sim_loss(out1, out2, label, row_tile=8)
    loss = jax.block_until_ready(loss)

    ref = sim_loss_reference(out1, out2, label)
    assert loss.shape == ()
    assert jnp.allclose(loss, ref, rtol=1e-2, atol=1e-2), (loss, ref)

    print("KERNEL_OK")
</pallas_src>

<mosaic_0001>
module attributes {stable_mosaic.version = 11 : i64} {
  func.func @_sim_loss_kernel(%arg0: i32, %arg1: memref<16x128xf32, #tpu.memory_space<vmem>>, %arg2: memref<16x128xf32, #tpu.memory_space<vmem>>, %arg3: memref<8x16xf32, #tpu.memory_space<vmem>>, %arg4: memref<8x16xf32, #tpu.memory_space<vmem>>, %arg5: memref<1x1xf32, #tpu.memory_space<smem>>) attributes {dimension_semantics = [#tpu.dimension_semantics<arbitrary>], iteration_bounds = array<i64: 2>, scalar_prefetch = 0 : i64, scratch_operands = 0 : i64, tpu.core_type = #tpu.core_type<tc>, window_params = [{pipeline_mode = #tpu.pipeline_mode<synchronous>, transform_indices = @transform_0, window_bounds = array<i64: 16, 128>}, {pipeline_mode = #tpu.pipeline_mode<synchronous>, transform_indices = @transform_1, window_bounds = array<i64: 16, 128>}, {transform_indices = @transform_2, window_bounds = array<i64: 8, 16>}, {transform_indices = @transform_3, window_bounds = array<i64: 8, 16>}, {transform_indices = @transform_4, window_bounds = array<i64: 1, 1>}]} {
    %c8_i32 = arith.constant 8 : i32
    %0 = arith.muli %arg0, %c8_i32 : i32
    %1 = tpu.assume_multiple %0, 8 : i32
    %2 = arith.index_cast %1 : i32 to index
    %c0 = arith.constant 0 : index
    %3 = vector.load %arg1[%2, %c0] : memref<16x128xf32, #tpu.memory_space<vmem>>, vector<8x128xf32>
    %4 = arith.index_cast %1 : i32 to index
    %c0_0 = arith.constant 0 : index
    %5 = vector.load %arg2[%4, %c0_0] : memref<16x128xf32, #tpu.memory_space<vmem>>, vector<8x128xf32>
    %c0_1 = arith.constant 0 : index
    %c0_2 = arith.constant 0 : index
    %6 = vector.load %arg1[%c0_1, %c0_2] : memref<16x128xf32, #tpu.memory_space<vmem>>, vector<16x128xf32>
    %c0_3 = arith.constant 0 : index
    %c0_4 = arith.constant 0 : index
    %7 = vector.load %arg2[%c0_3, %c0_4] : memref<16x128xf32, #tpu.memory_space<vmem>>, vector<16x128xf32>
    %cst = arith.constant dense<0.000000e+00> : vector<8x16xf32>
    %8 = tpu.matmul %5, %6, %cst {dimension_numbers = #tpu.dot_dimension_numbers<[1], [1], [0], [0], [0, 0, 1, 0], [], []>} : vector<8x128xf32>, vector<16x128xf32>, vector<8x16xf32> -> vector<8x16xf32>
    %cst_5 = arith.constant dense<0.000000e+00> : vector<8x16xf32>
    %9 = tpu.matmul %3, %7, %cst_5 {dimension_numbers = #tpu.dot_dimension_numbers<[1], [1], [0], [0], [0, 0, 1, 0], [], []>} : vector<8x128xf32>, vector<16x128xf32>, vector<8x16xf32> -> vector<8x16xf32>
    %c0_6 = arith.constant 0 : index
    %c0_7 = arith.constant 0 : index
    %10 = vector.load %arg3[%c0_6, %c0_7] : memref<8x16xf32, #tpu.memory_space<vmem>>, vector<8x16xf32>
    %cst_8 = arith.constant dense<0xFF800000> : vector<8xf32>
    %11 = vector.multi_reduction <maximumf>, %8, %cst_8 [1] : vector<8x16xf32> to vector<8xf32>
    %12 = vector.shape_cast %11 : vector<8xf32> to vector<8x1xf32>
    %13 = vector.broadcast %12 : vector<8x1xf32> to vector<8x16xf32>
    %14 = arith.subf %8, %13 : vector<8x16xf32>
    %15 = math.exp %14 : vector<8x16xf32>
    %cst_9 = arith.constant dense<0.000000e+00> : vector<8xf32>
    %16 = vector.multi_reduction <add>, %15, %cst_9 [1] : vector<8x16xf32> to vector<8xf32>
    %17 = vector.shape_cast %16 : vector<8xf32> to vector<8x1xf32>
    %18 = vector.broadcast %17 : vector<8x1xf32> to vector<8x16xf32>
    %19 = arith.divf %15, %18 : vector<8x16xf32>
    %cst_10 = arith.constant 9.99999974E-5 : f32
    %20 = vector.broadcast %cst_10 : f32 to vector<8x16xf32>
    %21 = arith.addf %19, %20 : vector<8x16xf32>
    %22 = math.log %21 : vector<8x16xf32>
    %23 = arith.mulf %10, %22 : vector<8x16xf32>
    %24 = vector.shape_cast %23 : vector<8x16xf32> to vector<1x8x16xf32>
    %cst_11 = arith.constant dense<0.000000e+00> : vector<1xf32>
    %25 = vector.multi_reduction <add>, %24, %cst_11 [1, 2] : vector<1x8x16xf32> to vector<1xf32>
    %26 = vector.shape_cast %25 : vector<1xf32> to vector<1x1x1xf32>
    %27 = vector.extract %26[0, 0, 0] : f32 from vector<1x1x1xf32>
    %c0_12 = arith.constant 0 : index
    %c0_13 = arith.constant 0 : index
    %28 = vector.load %arg4[%c0_12, %c0_13] : memref<8x16xf32, #tpu.memory_space<vmem>>, vector<8x16xf32>
    %cst_14 = arith.constant dense<0xFF800000> : vector<8xf32>
    %29 = vector.multi_reduction <maximumf>, %9, %cst_14 [1] : vector<8x16xf32> to vector<8xf32>
    %30 = vector.shape_cast %29 : vector<8xf32> to vector<8x1xf32>
    %31 = vector.broadcast %30 : vector<8x1xf32> to vector<8x16xf32>
    %32 = arith.subf %9, %31 : vector<8x16xf32>
    %33 = math.exp %32 : vector<8x16xf32>
    %cst_15 = arith.constant dense<0.000000e+00> : vector<8xf32>
    %34 = vector.multi_reduction <add>, %33, %cst_15 [1] : vector<8x16xf32> to vector<8xf32>
    %35 = vector.shape_cast %34 : vector<8xf32> to vector<8x1xf32>
    %36 = vector.broadcast %35 : vector<8x1xf32> to vector<8x16xf32>
    %37 = arith.divf %33, %36 : vector<8x16xf32>
    %cst_16 = arith.constant 9.99999974E-5 : f32
    %38 = vector.broadcast %cst_16 : f32 to vector<8x16xf32>
    %39 = arith.addf %37, %38 : vector<8x16xf32>
    %40 = math.log %39 : vector<8x16xf32>
    %41 = arith.mulf %28, %40 : vector<8x16xf32>
    %42 = vector.shape_cast %41 : vector<8x16xf32> to vector<1x8x16xf32>
    %cst_17 = arith.constant dense<0.000000e+00> : vector<1xf32>
    %43 = vector.multi_reduction <add>, %42, %cst_17 [1, 2] : vector<1x8x16xf32> to vector<1xf32>
    %44 = vector.shape_cast %43 : vector<1xf32> to vector<1x1x1xf32>
    %45 = vector.extract %44[0, 0, 0] : f32 from vector<1x1x1xf32>
    %46 = arith.addf %27, %45 : f32
    %cst_18 = arith.constant 0.000000e+00 : f32
    %47 = arith.subf %cst_18, %46 : f32
    %c0_i32 = arith.constant 0 : i32
    %48 = arith.cmpi eq, %arg0, %c0_i32 : i32
    %49 = arith.extui %48 : i1 to i32
    %c0_i32_19 = arith.constant 0 : i32
    %50 = arith.cmpi ne, %49, %c0_i32_19 : i32
    scf.if %50 {
      %cst_24 = arith.constant 0.000000e+00 : f32
      %c0_25 = arith.constant 0 : index
      %c0_26 = arith.constant 0 : index
      %54 = memref.load %arg5[%c0_25, %c0_26] : memref<1x1xf32, #tpu.memory_space<smem>>
      memref.store %cst_24, %arg5[%c0_25, %c0_26] : memref<1x1xf32, #tpu.memory_space<smem>>
    } else {
    }
    %c0_20 = arith.constant 0 : index
    %c0_21 = arith.constant 0 : index
    %51 = memref.load %arg5[%c0_20, %c0_21] : memref<1x1xf32, #tpu.memory_space<smem>>
    %52 = arith.addf %51, %47 : f32
    %c0_22 = arith.constant 0 : index
    %c0_23 = arith.constant 0 : index
    %53 = memref.load %arg5[%c0_22, %c0_23] : memref<1x1xf32, #tpu.memory_space<smem>>
    memref.store %52, %arg5[%c0_22, %c0_23] : memref<1x1xf32, #tpu.memory_space<smem>>
    return
  }
  func.func @transform_0(%arg0: i32) -> (i32, i32) {
    %c0_i32 = arith.constant 0 : i32
    %c0_i32_0 = arith.constant 0 : i32
    %c0_i32_1 = arith.constant 0 : i32
    return %c0_i32, %c0_i32_0 : i32, i32
  }
  func.func @transform_1(%arg0: i32) -> (i32, i32) {
    %c0_i32 = arith.constant 0 : i32
    %c0_i32_0 = arith.constant 0 : i32
    %c0_i32_1 = arith.constant 0 : i32
    return %c0_i32, %c0_i32_0 : i32, i32
  }
  func.func @transform_2(%arg0: i32) -> (i32, i32) {
    %c0_i32 = arith.constant 0 : i32
    %c0_i32_0 = arith.constant 0 : i32
    return %arg0, %c0_i32 : i32, i32
  }
  func.func @transform_3(%arg0: i32) -> (i32, i32) {
    %c0_i32 = arith.constant 0 : i32
    %c0_i32_0 = arith.constant 0 : i32
    return %arg0, %c0_i32 : i32, i32
  }
  func.func @transform_4(%arg0: i32) -> (i32, i32) {
    %c0_i32 = arith.constant 0 : i32
    %c0_i32_0 = arith.constant 0 : i32
    %c0_i32_1 = arith.constant 0 : i32
    return %c0_i32, %c0_i32_0 : i32, i32
  }
}

</mosaic_0001>

<llo_original>
// kernel: tpu_custom_call.1
$region0: #{tpu_custom_call.1}
  #allocation0 [shape = 'u32[]', space=smem, size = 0x4, offset = 0x4, fixed_abs, tag = 'smem constant byte address 0x4 - core index']
  #allocation1 [shape = 'u32[144,128]{1,0:T(1,128)}', space=vmem, size = 0x12000, scoped, tag = 'internal scratch']
  %s0 = inlined_call_operand.hbm [shape: f32[16,128], index: 0, kind: input, shape index: {}]
  %s1 = inlined_call_operand.hbm [shape: f32[16,128], index: 1, kind: input, shape index: {}]
  %s2 = inlined_call_operand.hbm [shape: f32[16,16], index: 2, kind: input, shape index: {}]
  %s3 = inlined_call_operand.hbm [shape: f32[16,16], index: 3, kind: input, shape index: {}]
  %s4 = inlined_call_operand.hbm [shape: f32[1,1], index: 4, kind: output, shape index: {}]
  %s5 = sld [smem:[#allocation0]]
  $region69: #{tpu_custom_call.1} parent=0
    _
  %s7 = ssub.s32 1, %s5
  %s8 = scalar_select 0, %s7, %s5
  $region1: #{tpu_custom_call.1} parent=0
    #allocation2 [shape = 'u8[8192]{0}', space=vmem, size = 0x2000, scoped, tag = 'input window, operand 0, single buffered']
    #allocation3 [shape = 's32[2]{0}', space=sflag, size = 0x8, scoped, tag = 'scoped memory for tpu_custom_call.1']
    #allocation4 [shape = 's32[2]{0}', space=sflag, size = 0x8, scoped, tag = 'scoped memory for tpu_custom_call.1']
    #allocation5 [shape = 'u8[8192]{0}', space=vmem, size = 0x2000, scoped, tag = 'input window, operand 1, single buffered']
    #allocation6 [shape = 's32[1]{0}', space=sflag, size = 0x4, scoped, tag = 'scoped memory for tpu_custom_call.1']
    #allocation7 [shape = 'u8[8192]{0}', space=vmem, size = 0x2000, scoped, tag = 'input window, operand 2']
    #allocation8 [shape = 'u8[8192]{0}', space=vmem, size = 0x2000, scoped, tag = 'input window, operand 3']
    #allocation9 [shape = 'u8[512]{0}', space=smem, size = 0x200, scoped, tag = 'output window, operand 0, single buffered']
    %9 = vsyncpa [#allocation3], 0
    %10 = vsyncpa [#allocation6], 0
    %11 = vsyncpa [#allocation4], 0
    loop: start=0, step=1, limit=4
    $region2: #{tpu_custom_call.1} parent=1 // loop_pre_header
      _
    $region3: #{tpu_custom_call.1} parent=1 // loop_header
      %s13 = sphi 0, %s17
      %p14 = scmp.ge.s32.totalorder %s13, 4
      %s21 = sphi 0, %s21
      %s23 = sphi 0, %s21
      %s24 = sphi 0, %s23
      %s38 = sphi 0, %s24
      %s42 = sphi 0, %s42
      %s44 = sphi 0, %s42
      %s45 = sphi 0, %s44
      %s59 = sphi 0, %s45
      %s65 = sphi 0, %s67
      %s68 = sphi 0, %s65
      %s69 = sphi 0, %s68
      %s85 = sphi 0, %s69
      %s91 = sphi 0, %s93
      %s94 = sphi 0, %s91
      %s95 = sphi 0, %s94
      %s111 = sphi 0, %s95
      %s115 = sphi 0, %s115
      %s117 = sphi 0, %s115
      %s118 = sphi 0, %s117
      %s132 = sphi 0, %s118
    $region4: #{tpu_custom_call.1} parent=1 // loop_header_branch
      %16 = sbr.rel (%p14) target = $region8
    $region5: #{tpu_custom_call.1} parent=1 // loop_body
      %s18 = ssub.s32 %s13, 1
      %s19 = ssub.s32 %s13, 2
      %s20 = sadd.s32 %s13, 1
      %s22 = sadd.s32 %s21, 1
      %p25 = scmp.eq.s32.totalorder %s13, 1
      %p26 = scmp.ne.s32.totalorder %s21, %s23
      %p27 = scmp.eq.s32.totalorder %s13, 0
      %p28 = por %p26, %p27
      %p29 = scmp.ne.s32.totalorder %s21, %s23
      %p30 = scmp.eq.s32.totalorder %s18, 1
      %p31 = por %p29, %p30
      %p32 = scmp.ne.s32.totalorder %s23, %s24
      %p33 = scmp.eq.s32.totalorder %s18, 0
      %p34 = por %p32, %p33
      %p35 = scmp.ne.s32.totalorder %s23, %s24
      %p36 = scmp.eq.s32.totalorder %s19, 1
      %p37 = por %p35, %p36
      %p39 = scmp.ne.s32.totalorder %s24, %s38
      %p40 = scmp.eq.s32.totalorder %s19, 0
      %p41 = por %p39, %p40
      %s43 = sadd.s32 %s42, 1
      %p46 = scmp.eq.s32.totalorder %s13, 1
      %p47 = scmp.ne.s32.totalorder %s42, %s44
      %p48 = scmp.eq.s32.totalorder %s13, 0
      %p49 = por %p47, %p48
      %p50 = scmp.ne.s32.totalorder %s42, %s44
      %p51 = scmp.eq.s32.totalorder %s18, 1
      %p52 = por %p50, %p51
      %p53 = scmp.ne.s32.totalorder %s44, %s45
      %p54 = scmp.eq.s32.totalorder %s18, 0
      %p55 = por %p53, %p54
      %p56 = scmp.ne.s32.totalorder %s44, %s45
      %p57 = scmp.eq.s32.totalorder %s19, 1
      %p58 = por %p56, %p57
      %p60 = scmp.ne.s32.totalorder %s45, %s59
      %p61 = scmp.eq.s32.totalorder %s19, 0
      %p62 = por %p60, %p61
      %s63 = ssub.s32 %s13, %s20
      %p64 = scmp.eq.s32.totalorder %s63, 0
      %s66 = sadd.s32 %s65, 1
      %s67 = scalar_select %p64, %s65, %s66
      %p70 = pneg %p64
      %p71 = scmp.eq.s32.totalorder %s13, 1
      %p72 = por %p70, %p71
      %p73 = scmp.ne.s32.totalorder %s65, %s68
      %p74 = scmp.eq.s32.totalorder %s13, 0
      %p75 = por %p73, %p74
      %p76 = scmp.ne.s32.totalorder %s65, %s68
      %p77 = scmp.eq.s32.totalorder %s18, 1
      %p78 = por %p76, %p77
      %p79 = scmp.ne.s32.totalorder %s68, %s69
      %p80 = scmp.eq.s32.totalorder %s18, 0
      %p81 = por %p79, %p80
      %p82 = scmp.ne.s32.totalorder %s68, %s69
      %p83 = scmp.eq.s32.totalorder %s19, 1
      %p84 = por %p82, %p83
      %p86 = scmp.ne.s32.totalorder %s69, %s85
      %p87 = scmp.eq.s32.totalorder %s19, 0
      %p88 = por %p86, %p87
      %s89 = ssub.s32 %s13, %s20
      %p90 = scmp.eq.s32.totalorder %s89, 0
      %s92 = sadd.s32 %s91, 1
      %s93 = scalar_select %p90, %s91, %s92
      %p96 = pneg %p90
      %p97 = scmp.eq.s32.totalorder %s13, 1
      %p98 = por %p96, %p97
      %p99 = scmp.ne.s32.totalorder %s91, %s94
      %p100 = scmp.eq.s32.totalorder %s13, 0
      %p101 = por %p99, %p100
      %p102 = scmp.ne.s32.totalorder %s91, %s94
      %p103 = scmp.eq.s32.totalorder %s18, 1
      %p104 = por %p102, %p103
      %p105 = scmp.ne.s32.totalorder %s94, %s95
      %p106 = scmp.eq.s32.totalorder %s18, 0
      %p107 = por %p105, %p106
      %p108 = scmp.ne.s32.totalorder %s94, %s95
      %p109 = scmp.eq.s32.totalorder %s19, 1
      %p110 = por %p108, %p109
      %p112 = scmp.ne.s32.totalorder %s95, %s111
      %p113 = scmp.eq.s32.totalorder %s19, 0
      %p114 = por %p112, %p113
      %s116 = sadd.s32 %s115, 1
      %p119 = scmp.eq.s32.totalorder %s13, 1
      %p120 = scmp.ne.s32.totalorder %s115, %s117
      %p121 = scmp.eq.s32.totalorder %s13, 0
      %p122 = por %p120, %p121
      %p123 = scmp.ne.s32.totalorder %s115, %s117
      %p124 = scmp.eq.s32.totalorder %s18, 1
      %p125 = por %p123, %p124
      %p126 = scmp.ne.s32.totalorder %s117, %s118
      %p127 = scmp.eq.s32.totalorder %s18, 0
      %p128 = por %p126, %p127
      %p129 = scmp.ne.s32.totalorder %s117, %s118
      %p130 = scmp.eq.s32.totalorder %s19, 1
      %p131 = por %p129, %p130
      %p133 = scmp.ne.s32.totalorder %s118, %s132
      %p134 = scmp.eq.s32.totalorder %s19, 0
      %p135 = por %p133, %p134
      %p136 = scmp.le.s32.totalorder 1, %s13
      %p137 = scmp.lt.s32.totalorder %s13, 3
      %p138 = pnand %p136, %p137
      %p139 = pneg %p138
      // Predicated region
      $region9: #{tpu_custom_call.1} parent=5 // pred_check
        _
      $region10: #{tpu_custom_call.1} parent=5 // pred_check_branch
        %141 = sbr.rel (%p138) target = $region12
      $region11: #{tpu_custom_call.1} parent=5 // pred_region
        %s142 = ssub.s32 %s13, 1
        // Predicated region
        $region13: #{tpu_custom_call.1} parent=11 // pred_check
          %p143 = pneg %p34
        $region14: #{tpu_custom_call.1} parent=11 // pred_check_branch
          %145 = sbr.rel (%p143) target = $region16
        $region15: #{tpu_custom_call.1} parent=11 // pred_region
          %s147 = ssub.s32 256, 256
          %148 = vsyncadd [#allocation3], %s147
          %s149 = sshll.u32 [#allocation2], 4
          %s150 = int_to_ptr.vmem [resolvable:$true] %s149
          %155 = dma.hbm_to_vmem [thread:$0]  %s0, 256, %s150, [#allocation3], 128, 128, 8
        $region16: #{tpu_custom_call.1} parent=11 // pred_fallthru
          _
        // Predicated region
        $region17: #{tpu_custom_call.1} parent=11 // pred_check
          %p156 = pneg %p55
        $region18: #{tpu_custom_call.1} parent=11 // pred_check_branch
          %158 = sbr.rel (%p156) target = $region20
        $region19: #{tpu_custom_call.1} parent=11 // pred_region
          %s160 = ssub.s32 256, 256
          %161 = vsyncadd [#allocation6], %s160
          %s162 = sshll.u32 [#allocation5], 4
          %s163 = int_to_ptr.vmem [resolvable:$true] %s162
          %168 = dma.hbm_to_vmem [thread:$0]  %s1, 256, %s163, [#allocation6], 128, 128, 8
        $region20: #{tpu_custom_call.1} parent=11 // pred_fallthru
          _
      $region12: #{tpu_custom_call.1} parent=5 // pred_fallthru
        _
      %p169 = scmp.lt.s32.totalorder %s13, 2
      // Predicated region
      $region21: #{tpu_custom_call.1} parent=5 // pred_check
        %p170 = pneg %p169
      $region22: #{tpu_custom_call.1} parent=5 // pred_check_branch
        %172 = sbr.rel (%p170) target = $region24
      $region23: #{tpu_custom_call.1} parent=5 // pred_region
        // Predicated region
        $region25: #{tpu_custom_call.1} parent=23 // pred_check
          %p173 = pneg %p75
        $region26: #{tpu_custom_call.1} parent=23 // pred_check_branch
          %175 = sbr.rel (%p173) target = $region28
        $region27: #{tpu_custom_call.1} parent=23 // pred_region
          %s176 = sand.u32 %s13, 1
          %s177 = scalar_lea.sflag [#allocation3], %s176
          %s178 = sand.u32 %s65, 1
          %s179 = smul.addr %s178, 8
          %s180 = scalar_lea.vmem [#allocation7], %s179
          %s182 = ssub.s32 128, 128
          %183 = vsyncadd %s177, %s182
          %s184 = smul.addr %s13, 128
          %s185 = scalar_lea.hbm %s2, %s184
          %s187 = sshll.u32 %s180, 4
          %s188 = int_to_ptr.vmem [resolvable:$true] %s187
          %190 = dma.hbm_to_vmem [thread:$0]  %s185, 128, %s188, %s177
        $region28: #{tpu_custom_call.1} parent=23 // pred_fallthru
          _
        // Predicated region
        $region29: #{tpu_custom_call.1} parent=23 // pred_check
          %p191 = pneg %p101
        $region30: #{tpu_custom_call.1} parent=23 // pred_check_branch
          %193 = sbr.rel (%p191) target = $region32
        $region31: #{tpu_custom_call.1} parent=23 // pred_region
          %s194 = sand.u32 %s13, 1
          %s195 = scalar_lea.sflag [#allocation3], %s194
          %s196 = sand.u32 %s91, 1
          %s197 = smul.addr %s196, 8
          %s198 = scalar_lea.vmem [#allocation8], %s197
          %s200 = ssub.s32 128, 128
          %201 = vsyncadd %s195, %s200
          %s202 = smul.addr %s13, 128
          %s203 = scalar_lea.hbm %s3, %s202
          %s205 = sshll.u32 %s198, 4
          %s206 = int_to_ptr.vmem [resolvable:$true] %s205
          %208 = dma.hbm_to_vmem [thread:$0]  %s203, 128, %s206, %s195
        $region32: #{tpu_custom_call.1} parent=23 // pred_fallthru
          _
      $region24: #{tpu_custom_call.1} parent=5 // pred_fallthru
        _
      %p209 = scmp.le.s32.totalorder 1, %s13
      %p210 = scmp.lt.s32.totalorder %s13, 3
      %p211 = pnand %p209, %p210
      %p212 = pneg %p211
      // Predicated region
      $region33: #{tpu_custom_call.1} parent=5 // pred_check
        _
      $region34: #{tpu_custom_call.1} parent=5 // pred_check_branch
        %214 = sbr.rel (%p211) target = $region36
      $region35: #{tpu_custom_call.1} parent=5 // pred_region
        %s215 = ssub.s32 %s13, 1
        // Predicated region
        $region37: #{tpu_custom_call.1} parent=35 // pred_check
          %p216 = pneg %p34
        $region38: #{tpu_custom_call.1} parent=35 // pred_check_branch
          %218 = sbr.rel (%p216) target = $region40
        $region39: #{tpu_custom_call.1} parent=35 // pred_region
          %219 = dma.done [#allocation3], 256
        $region40: #{tpu_custom_call.1} parent=35 // pred_fallthru
          _
        // Predicated region
        $region41: #{tpu_custom_call.1} parent=35 // pred_check
          %p220 = pneg %p55
        $region42: #{tpu_custom_call.1} parent=35 // pred_check_branch
          %222 = sbr.rel (%p220) target = $region44
        $region43: #{tpu_custom_call.1} parent=35 // pred_region
          %223 = dma.done [#allocation6], 256
        $region44: #{tpu_custom_call.1} parent=35 // pred_fallthru
          _
        %s224 = sand.u32 %s18, 1
        %s225 = scalar_lea.sflag [#allocation3], %s224
        %s226 = sand.u32 %s68, 1
        %s227 = smul.addr %s226, 8
        %s228 = scalar_lea.vmem [#allocation7], %s227
        // Predicated region
        $region45: #{tpu_custom_call.1} parent=35 // pred_check
          %p229 = pneg %p81
        $region46: #{tpu_custom_call.1} parent=35 // pred_check_branch
          %231 = sbr.rel (%p229) target = $region48
        $region47: #{tpu_custom_call.1} parent=35 // pred_region
          %232 = dma.done %s225, 128
        $region48: #{tpu_custom_call.1} parent=35 // pred_fallthru
          _
        %s233 = sand.u32 %s18, 1
        %s234 = scalar_lea.sflag [#allocation3], %s233
        %s235 = sand.u32 %s94, 1
        %s236 = smul.addr %s235, 8
        %s237 = scalar_lea.vmem [#allocation8], %s236
        // Predicated region
        $region49: #{tpu_custom_call.1} parent=35 // pred_check
          %p238 = pneg %p107
        $region50: #{tpu_custom_call.1} parent=35 // pred_check_branch
          %240 = sbr.rel (%p238) target = $region52
        $region51: #{tpu_custom_call.1} parent=35 // pred_region
          %241 = dma.done %s234, 128
        $region52: #{tpu_custom_call.1} parent=35 // pred_fallthru
          _
        %p242 = pneg %p34
        %p243 = pneg %p31
        %p244 = pneg %p55
        %p245 = pneg %p52
        %s246 = sand.u32 %s18, 1
        %s247 = scalar_lea.sflag [#allocation3], %s246
        %s248 = sand.u32 %s68, 1
        %s249 = smul.addr %s248, 8
        %s250 = scalar_lea.vmem [#allocation7], %s249
        %p251 = pneg %p81
        %p252 = pneg %p78
        %s253 = sand.u32 %s18, 1
        %s254 = scalar_lea.sflag [#allocation3], %s253
        %s255 = sand.u32 %s94, 1
        %s256 = smul.addr %s255, 8
        %s257 = scalar_lea.vmem [#allocation8], %s256
        %p258 = pneg %p107
        %p259 = pneg %p104
        %p260 = pneg %p128
        %p261 = pneg %p125
        %s262 = smul.u32 %s18, 8
        %s263 = scalar_lea.vmem [#allocation2], %s262
        %v264 = vld [vmem:[%s263] sm:$0xff]
        %s265 = scalar_lea.vmem [#allocation5], %s262
        %v266 = vld [vmem:[%s265] sm:$0xff]
        %v267 = vld [vmem:[#allocation2] sm:$0xff]
        %v268 = vld [vmem:[#allocation2 + $0x8] sm:$0xff]
        %v269 = vld [vmem:[#allocation5] sm:$0xff]
        %v270 = vld [vmem:[#allocation5 + $0x8] sm:$0xff]
        %271 = vmatprep.subr.mxu0 0.0
        %272 = vmatpush1.xpose.msra.mxu0 0.0
        %273 = vmatprep.subr.mxu0 0.0
        %274 = vmatpush1.xpose.msra.mxu0 0.0
        %275 = vmatprep.subr.mxu0 0.0
        %276 = vmatpush1.xpose.msra.mxu0 0.0
        %277 = vmatprep.subr.mxu0 0.0
        %278 = vmatpush1.xpose.msra.mxu0 0.0
        %279 = vmatprep.subr.mxu0 0.0
        %280 = vmatpush1.xpose.msra.mxu0 0.0
        %281 = vmatprep.subr.mxu0 0.0
        %282 = vmatpush1.xpose.msra.mxu0 0.0
        %283 = vmatprep.subr.mxu0 0.0
        %284 = vmatpush1.xpose.msra.mxu0 0.0
        %285 = vmatprep.subr.mxu0 0.0
        %286 = vmatpush1.xpose.msra.mxu0 0.0
        %287 = vmatprep.subr.mxu0 0.0
        %288 = vmatpush1.xpose.msra.mxu0 0.0
        %289 = vmatprep.subr.mxu0 0.0
        %290 = vmatpush1.xpose.msra.mxu0 0.0
        %291 = vmatprep.subr.mxu0 0.0
        %292 = vmatpush1.xpose.msra.mxu0 0.0
        %293 = vmatprep.subr.mxu0 0.0
        %294 = vmatpush1.xpose.msra.mxu0 0.0
        %295 = vmatprep.subr.mxu0 0.0
        %296 = vmatpush1.xpose.msra.mxu0 0.0
        %297 = vmatprep.subr.mxu0 0.0
        %298 = vmatpush1.xpose.msra.mxu0 0.0
        %299 = vmatprep.subr.mxu0 0.0
        %300 = vmatpush1.xpose.msra.mxu0 %v268
        %301 = vmatprep.subr.mxu0 0.0
        %302 = vmatpush1.xpose.msra.mxu0 %v267
        %303 = vmatprep.subr.mxu0 0.0
        %304 = vmatpush2.xpose.msra.mxu0 0.0
        %305 = vmatprep.subr.mxu0 0.0
        %306 = vmatpush2.xpose.msra.mxu0 0.0
        %307 = vmatprep.subr.mxu0 0.0
        %308 = vmatpush2.xpose.msra.mxu0 0.0
        %309 = vmatprep.subr.mxu0 0.0
        %310 = vmatpush2.xpose.msra.mxu0 0.0
        %311 = vmatprep.subr.mxu0 0.0
        %312 = vmatpush2.xpose.msra.mxu0 0.0
        %313 = vmatprep.subr.mxu0 0.0
        %314 = vmatpush2.xpose.msra.mxu0 0.0
        %315 = vmatprep.subr.mxu0 0.0
        %316 = vmatpush2.xpose.msra.mxu0 0.0
        %317 = vmatprep.subr.mxu0 0.0
        %318 = vmatpush2.xpose.msra.mxu0 0.0
        %319 = vmatprep.subr.mxu0 0.0
        %320 = vmatpush2.xpose.msra.mxu0 0.0
        %321 = vmatprep.subr.mxu0 0.0
        %322 = vmatpush2.xpose.msra.mxu0 0.0
        %323 = vmatprep.subr.mxu0 0.0
        %324 = vmatpush2.xpose.msra.mxu0 0.0
        %325 = vmatprep.subr.mxu0 0.0
        %326 = vmatpush2.xpose.msra.mxu0 0.0
        %327 = vmatprep.subr.mxu0 0.0
        %328 = vmatpush2.xpose.msra.mxu0 0.0
        %329 = vmatprep.subr.mxu0 0.0
        %330 = vmatpush2.xpose.msra.mxu0 0.0
        %331 = vmatprep.subr.mxu0 0.0
        %332 = vmatpush2.xpose.msra.mxu0 0.0
        %333 = vmatprep.subr.mxu0 0.0
        %334 = vmatpush2.xpose.msra.mxu0 0.0
        %335 = vmatprep.mubr.f32.mxu0 0.0
        %336 = vmatmul.mubr.f32.gmra.mxu0 %v266
        %v337 = vpop.f32.mrf.mxu0
        %v338 = vadd.f32 0.0, %v337
        %v339 = vpop.f32.mrf.mxu0
        %340 = vdwg.mxu0
        %341 = vmatprep.subr.mxu0 0.0
        %342 = vmatpush1.xpose.msra.mxu0 0.0
        %343 = vmatprep.subr.mxu0 0.0
        %344 = vmatpush1.xpose.msra.mxu0 0.0
        %345 = vmatprep.subr.mxu0 0.0
        %346 = vmatpush1.xpose.msra.mxu0 0.0
        %347 = vmatprep.subr.mxu0 0.0
        %348 = vmatpush1.xpose.msra.mxu0 0.0
        %349 = vmatprep.subr.mxu0 0.0
        %350 = vmatpush1.xpose.msra.mxu0 0.0
        %351 = vmatprep.subr.mxu0 0.0
        %352 = vmatpush1.xpose.msra.mxu0 0.0
        %353 = vmatprep.subr.mxu0 0.0
        %354 = vmatpush1.xpose.msra.mxu0 0.0
        %355 = vmatprep.subr.mxu0 0.0
        %356 = vmatpush1.xpose.msra.mxu0 0.0
        %357 = vmatprep.subr.mxu0 0.0
        %358 = vmatpush1.xpose.msra.mxu0 0.0
        %359 = vmatprep.subr.mxu0 0.0
        %360 = vmatpush1.xpose.msra.mxu0 0.0
        %361 = vmatprep.subr.mxu0 0.0
        %362 = vmatpush1.xpose.msra.mxu0 0.0
        %363 = vmatprep.subr.mxu0 0.0
        %364 = vmatpush1.xpose.msra.mxu0 0.0
        %365 = vmatprep.subr.mxu0 0.0
        %366 = vmatpush1.xpose.msra.mxu0 0.0
        %367 = vmatprep.subr.mxu0 0.0
        %368 = vmatpush1.xpose.msra.mxu0 0.0
        %369 = vmatprep.subr.mxu0 0.0
        %370 = vmatpush1.xpose.msra.mxu0 %v270
        %371 = vmatprep.subr.mxu0 0.0
        %372 = vmatpush1.xpose.msra.mxu0 %v269
        %373 = vmatprep.subr.mxu0 0.0
        %374 = vmatpush2.xpose.msra.mxu0 0.0
        %375 = vmatprep.subr.mxu0 0.0
        %376 = vmatpush2.xpose.msra.mxu0 0.0
        %377 = vmatprep.subr.mxu0 0.0
        %378 = vmatpush2.xpose.msra.mxu0 0.0
        %379 = vmatprep.subr.mxu0 0.0
        %380 = vmatpush2.xpose.msra.mxu0 0.0
        %381 = vmatprep.subr.mxu0 0.0
        %382 = vmatpush2.xpose.msra.mxu0 0.0
        %383 = vmatprep.subr.mxu0 0.0
        %384 = vmatpush2.xpose.msra.mxu0 0.0
        %385 = vmatprep.subr.mxu0 0.0
        %386 = vmatpush2.xpose.msra.mxu0 0.0
        %387 = vmatprep.subr.mxu0 0.0
        %388 = vmatpush2.xpose.msra.mxu0 0.0
        %389 = vmatprep.subr.mxu0 0.0
        %390 = vmatpush2.xpose.msra.mxu0 0.0
        %391 = vmatprep.subr.mxu0 0.0
        %392 = vmatpush2.xpose.msra.mxu0 0.0
        %393 = vmatprep.subr.mxu0 0.0
        %394 = vmatpush2.xpose.msra.mxu0 0.0
        %395 = vmatprep.subr.mxu0 0.0
        %396 = vmatpush2.xpose.msra.mxu0 0.0
        %397 = vmatprep.subr.mxu0 0.0
        %398 = vmatpush2.xpose.msra.mxu0 0.0
        %399 = vmatprep.subr.mxu0 0.0
        %400 = vmatpush2.xpose.msra.mxu0 0.0
        %401 = vmatprep.subr.mxu0 0.0
        %402 = vmatpush2.xpose.msra.mxu0 0.0
        %403 = vmatprep.subr.mxu0 0.0
        %404 = vmatpush2.xpose.msra.mxu0 0.0
        %405 = vmatprep.mubr.f32.mxu0 0.0
        %406 = vmatmul.mubr.f32.gmra.mxu0 %v264
        %v407 = vpop.f32.mrf.mxu0
        %v408 = vadd.f32 0.0, %v407
        %v409 = vpop.f32.mrf.mxu0
        %410 = vdwg.mxu0
        %v411 = vld [vmem:[%s228] sm:$0xff]
        %vm412 = vcmask 130048
        %v413 = vsel %vm412, %v338, -inf
        %414 = vmax.xlane.f32.xlu0 %v413
        %v415 = vpop.xlane.xlu0 %414
        %v416 = vsub.f32 %v338, %v415
        %v417 = vmul.f32 %v416, 1.442695
        %v418 = vpow.pop %v417
        %v419 = vsel %vm412, %v418, 0.0
        %420 = vadd.xlane.f32.xlu0 %v419
        %v421 = vpop.xlane.xlu0 %420
        %v422 = vrcp.pop %v421
        %v423 = vmul.f32 %v418, %v422
        %v424 = vadd.f32 %v423, 0.0001
        %v425 = vlog2.pop %v424
        %v426 = vmul.f32 %v425, 0.6931472
        %v427 = vmul.f32 %v411, %v426
        %v428 = vsel %vm412, %v427, 0.0
        %429 = vadd.xlane.f32.xlu0 %v428
        %v430 = vpop.xlane.xlu0 %429
        %v431 = vrot.slane %v430, 4
        %v432 = vadd.f32 %v430, %v431
        %v433 = vrot.slane %v432, 2
        %v434 = vadd.f32 %v432, %v433
        %v435 = vrot.slane %v434, 1
        %v436 = vadd.f32 %v434, %v435
        %s437 = vtos %v436
        %v438 = vld [vmem:[%s237] sm:$0xff]
        %v439 = vsel %vm412, %v408, -inf
        %440 = vmax.xlane.f32.xlu0 %v439
        %v441 = vpop.xlane.xlu0 %440
        %v442 = vsub.f32 %v408, %v441
        %v443 = vmul.f32 %v442, 1.442695
        %v444 = vpow.pop %v443
        %v445 = vsel %vm412, %v444, 0.0
        %446 = vadd.xlane.f32.xlu0 %v445
        %v447 = vpop.xlane.xlu0 %446
        %v448 = vrcp.pop %v447
        %v449 = vmul.f32 %v444, %v448
        %v450 = vadd.f32 %v449, 0.0001
        %v451 = vlog2.pop %v450
        %v452 = vmul.f32 %v451, 0.6931472
        %v453 = vmul.f32 %v438, %v452
        %v454 = vsel %vm412, %v453, 0.0
        %455 = vadd.xlane.f32.xlu0 %v454
        %v456 = vpop.xlane.xlu0 %455
        %v457 = vrot.slane %v456, 4
        %v458 = vadd.f32 %v456, %v457
        %v459 = vrot.slane %v458, 2
        %v460 = vadd.f32 %v458, %v459
        %v461 = vrot.slane %v460, 1
        %v462 = vadd.f32 %v460, %v461
        %s463 = vtos %v462
        %s464 = sadd.f32 %s437, %s463
        %s465 = ssub.f32 0.0, %s464
        %p466 = scmp.eq.s32.totalorder %s18, 0
        // Predicated region
        $region53: #{tpu_custom_call.1} parent=35 // pred_check
          %p467 = pneg %p466
        $region54: #{tpu_custom_call.1} parent=35 // pred_check_branch
          %469 = sbr.rel (%p467) target = $region56
        $region55: #{tpu_custom_call.1} parent=35 // pred_region
          %s470 = scalar_lea.smem [#allocation9], 0
          %471 = sst [smem:[%s470]] 0.0
        $region56: #{tpu_custom_call.1} parent=35 // pred_fallthru
          _
        %s472 = sld [smem:[#allocation9]]
        %s473 = sadd.f32 %s472, %s465
        %s474 = scalar_lea.smem [#allocation9], 0
        %475 = sst [smem:[%s474]] %s473
        // Predicated region
        $region57: #{tpu_custom_call.1} parent=35 // pred_check
          %p476 = pneg %p125
        $region58: #{tpu_custom_call.1} parent=35 // pred_check_branch
          %478 = sbr.rel (%p476) target = $region60
        $region59: #{tpu_custom_call.1} parent=35 // pred_region
          %s480 = ssub.s32 16, 16
          %481 = vsyncadd [#allocation4], %s480
          %484 = dma.smem_to_hbm [#allocation9], 16, %s4, [#allocation4]
        $region60: #{tpu_custom_call.1} parent=35 // pred_fallthru
          _
        // Predicated region
        $region61: #{tpu_custom_call.1} parent=35 // pred_check
          %p485 = pneg %p125
        $region62: #{tpu_custom_call.1} parent=35 // pred_check_branch
          %487 = sbr.rel (%p485) target = $region64
        $region63: #{tpu_custom_call.1} parent=35 // pred_region
          %488 = dma.done [#allocation4], 16
        $region64: #{tpu_custom_call.1} parent=35 // pred_fallthru
          _
        %489 = sfence
      $region36: #{tpu_custom_call.1} parent=5 // pred_fallthru
        _
      %p490 = scmp.le.s32.totalorder 2, %s13
      // Predicated region
      $region65: #{tpu_custom_call.1} parent=5 // pred_check
        %p491 = pneg %p490
      $region66: #{tpu_custom_call.1} parent=5 // pred_check_branch
        %493 = sbr.rel (%p491) target = $region68
      $region67: #{tpu_custom_call.1} parent=5 // pred_region
        %s494 = ssub.s32 %s13, 2
      $region68: #{tpu_custom_call.1} parent=5 // pred_fallthru
        _
    $region6: #{tpu_custom_call.1} parent=1 // loop_footer
      %s17 = sadd.s32 1, %s13
    $region7: #{tpu_custom_call.1} parent=1 // loop_footer_branch
      %12 = sbr.rel target = $region3
    $region8: #{tpu_custom_call.1} parent=1 // loop_exit
      _
    %495 = vsyncpa [#allocation3], 1
    %s496 = scalar_lea.sflag [#allocation3], 1
    %497 = vsyncpa %s496, 1
    %498 = vsyncpa [#allocation6], 1
    %499 = vsyncpa [#allocation4], 1
    %s500 = scalar_lea.sflag [#allocation4], 1
    %501 = vsyncpa %s500, 1

</llo_original>
